<compile_context>
chip_gen: v7x
topology: tpu7x:2x2x1
jax: 0.10.0
libtpu: 0.0.40
codegen_flags: <defaults>
</compile_context>

<pallas_src>
import jax
import jax.numpy as jnp
from jax.experimental import pallas as pl
from jax.experimental.pallas import tpu as pltpu

N_IN = 2
N_HID = 10
N_OUT = 1


def _round_up(n, m):
    return ((n + m - 1) // m) * m


def _cdiv(a, b):
    return -(-a // b)


def net_kernel(x_ref, w1_ref, b1_ref, w2_ref, b2_ref, o_ref):
    # x_ref : VMEM (2, R, 128)  feature-major; batch dense on sublanes AND lanes
    # w1_ref: SMEM (20,)        Linear(2,10).weight, row-major [out, in]
    # b1_ref: SMEM (10,)        Linear(2,10).bias
    # w2_ref: SMEM (10,)        Linear(10,1).weight
    # b2_ref: SMEM (1,)         Linear(10,1).bias
    # o_ref : VMEM (R, 128)     fully dense output tile
    x0 = x_ref[0]  # (R, 128)
    x1 = x_ref[1]  # (R, 128)

    # Linear(2,10) + ReLU + Linear(10,1), fully unrolled on the VPU (no MXU,
    # no XLU).  f = 0 initializes the accumulator with the output bias folded
    # in, trimming the zeros_like broadcast and two extra adds.
    h = jnp.maximum(w1_ref[0] * x0 + w1_ref[1] * x1 + b1_ref[0], 0.0)
    acc = w2_ref[0] * h + b2_ref[0]
    for f in range(1, N_HID):
        h = jnp.maximum(
            w1_ref[2 * f] * x0 + w1_ref[2 * f + 1] * x1 + b1_ref[f], 0.0
        )
        acc = acc + w2_ref[f] * h
    y = acc  # (R, 128) pre-softmax logits

    # Softmax over the size-1 output-feature axis: max(y) == y and
    # sum(exp(y - max)) == 1, so softmax(y) == exp(y - y).  One sub + one EUP
    # exp keeps torch's NaN/inf propagation; the reductions are dropped.
    o_ref[...] = jnp.exp(y - y).astype(o_ref.dtype)


def _plan_blocks(batch, block_rows):
    """Pick (rows-per-block, grid-steps) for the dense (rows, 128) packing."""
    rows = _cdiv(max(batch, 1), 128)   # rows of 128 batch elements each
    rows8 = _round_up(rows, 8)         # sublane-aligned row count
    if rows8 <= 8:
        return 8, 1                    # one minimal tile; nothing to split
    steps = max(2, _cdiv(rows8, max(block_rows, 8)))
    if steps % 2:
        steps += 1                     # even step count -> balanced on v7x's 2 TCs
    block = _round_up(_cdiv(rows8, steps), 8)
    return block, steps


def net_forward_feature_major(xt, w1, b1, w2, b2, *, block_rows=4096):
    """Forward pass with a feature-major input.  xt: (2, B) float32."""
    B = xt.shape[1]
    block, steps = _plan_blocks(B, block_rows)
    rows_p = block * steps
    Bp = rows_p * 128

    # Pad the batch, then a pure-metadata reshape to dense (2, rows, 128):
    # batch fills sublanes and lanes, so tiles carry no layout padding.
    xt = jnp.pad(xt.astype(jnp.float32), ((0, 0), (0, Bp - B)))
    xt = xt.reshape(N_IN, rows_p, 128)

    # Parameters as flat f32 scalars in SMEM (no VMEM tiles / vregs burned).
    w1f = w1.astype(jnp.float32).reshape(-1)   # (20,)
    b1f = b1.astype(jnp.float32).reshape(-1)   # (10,)
    w2f = w2.astype(jnp.float32).reshape(-1)   # (10,)
    b2f = b2.astype(jnp.float32).reshape(-1)   # (1,)

    # Double-buffered x + out tiles plus fixed headroom: explicit so the same
    # block size is safe on v7x's 64 MiB VMEM as well as v5e/v6e's 128 MiB.
    tile_bytes = (N_IN + 1) * block * 128 * 4
    vmem_limit = 2 * tile_bytes + (4 << 20)

    smem = pl.BlockSpec(memory_space=pltpu.MemorySpace.SMEM)
    out = pl.pallas_call(
        net_kernel,
        out_shape=jax.ShapeDtypeStruct((rows_p, 128), jnp.float32),
        grid=(steps,),
        in_specs=[
            pl.BlockSpec((N_IN, block, 128), lambda i: (0, i, 0)),  # x: pipelined DMA
            smem, smem, smem, smem,                                 # params: SMEM scalars
        ],
        out_specs=pl.BlockSpec((block, 128), lambda i: (i, 0)),     # dense (rows,128) store
        compiler_params=pltpu.CompilerParams(
            dimension_semantics=("parallel",),   # megacore-splittable batch axis
            vmem_limit_bytes=vmem_limit),
    )(xt, w1f, b1f, w2f, b2f)

    return out.reshape(Bp)[:B].reshape(B, N_OUT)


def net_forward(x, w1, b1, w2, b2, *, block_rows=4096):
    """Forward pass of Net.

    x : (B, 2) float32        (PyTorch input layout)
    w1: (10, 2), b1: (10,)    (nn.Linear(2, 10) weight/bias)
    w2: (1, 10), b2: (1,)     (nn.Linear(10, 1) weight/bias)
    returns (B, 1) float32 == Softmax(Linear(ReLU(Linear(x))))
    """
    # NOTE(perf): wrapper-side relayout; produce (2, B) upstream and call
    # net_forward_feature_major to skip this extra HBM pass for large B.
    return net_forward_feature_major(
        x.astype(jnp.float32).T, w1, b1, w2, b2, block_rows=block_rows)


if __name__ == "__main__":
    key = jax.random.PRNGKey(0)
    k_x, k_w1, k_b1, k_w2, k_b2 = jax.random.split(key, 5)

    # nn.Linear parameter layout: weight [out, in], bias [out].
    w1 = jax.random.normal(k_w1, (N_HID, N_IN), dtype=jnp.float32) * 0.5
    b1 = jax.random.normal(k_b1, (N_HID,), dtype=jnp.float32) * 0.1
    w2 = jax.random.normal(k_w2, (N_OUT, N_HID), dtype=jnp.float32) * 0.5
    b2 = jax.random.normal(k_b2, (N_OUT,), dtype=jnp.float32) * 0.1

    def reference(x):
        # Pure-JAX reference (identical math to the PyTorch module).
        h = jnp.maximum(x @ w1.T + b1, 0.0)
        return jax.nn.softmax(h @ w2.T + b2, axis=-1)  # size-1 dim -> all 1.0

    # Small batch: single minimal (8, 128) tile.
    B = 8
    x = jax.random.normal(k_x, (B, N_IN), dtype=jnp.float32)
    out = jax.block_until_ready(net_forward(x, w1, b1, w2, b2))
    assert out.shape == (B, N_OUT)
    assert jnp.allclose(out, reference(x), atol=1e-6, rtol=1e-6)

    # Two balanced parallel grid steps (megacore path) with a padded tail.
    B2 = 1100
    x2 = jax.random.normal(k_x, (B2, N_IN), dtype=jnp.float32)
    out2 = jax.block_until_ready(net_forward(x2, w1, b1, w2, b2))
    assert out2.shape == (B2, N_OUT)
    assert jnp.allclose(out2, reference(x2), atol=1e-6, rtol=1e-6)

    # Force several grid steps + fully padded tail rows (exercises the planner).
    B3 = 5000
    x3 = jax.random.normal(k_x, (B3, N_IN), dtype=jnp.float32)
    out3 = jax.block_until_ready(net_forward(x3, w1, b1, w2, b2, block_rows=8))
    assert out3.shape == (B3, N_OUT)
    assert jnp.allclose(out3, reference(x3), atol=1e-6, rtol=1e-6)

    print("KERNEL_OK")
</pallas_src>

<mosaic_0001>
module attributes {stable_mosaic.version = 11 : i64} {
  func.func @net_kernel(%arg0: i32, %arg1: memref<2x8x128xf32, #tpu.memory_space<vmem>>, %arg2: memref<20xf32, #tpu.memory_space<smem>>, %arg3: memref<10xf32, #tpu.memory_space<smem>>, %arg4: memref<10xf32, #tpu.memory_space<smem>>, %arg5: memref<1xf32, #tpu.memory_space<smem>>, %arg6: memref<8x128xf32, #tpu.memory_space<vmem>>) attributes {dimension_semantics = [#tpu.dimension_semantics<parallel>], iteration_bounds = array<i64: 1>, scalar_prefetch = 0 : i64, scratch_operands = 0 : i64, tpu.core_type = #tpu.core_type<tc>, window_params = [{transform_indices = @transform_0, window_bounds = array<i64: 2, 8, 128>}, {transform_indices = @transform_1, window_bounds = array<i64: 20>}, {transform_indices = @transform_2, window_bounds = array<i64: 10>}, {transform_indices = @transform_3, window_bounds = array<i64: 10>}, {transform_indices = @transform_4, window_bounds = array<i64: 1>}, {transform_indices = @transform_5, window_bounds = array<i64: 8, 128>}]} {
    %c0 = arith.constant 0 : index
    %c0_0 = arith.constant 0 : index
    %c0_1 = arith.constant 0 : index
    %0 = vector.load %arg1[%c0, %c0_0, %c0_1] : memref<2x8x128xf32, #tpu.memory_space<vmem>>, vector<1x8x128xf32>
    %1 = vector.shape_cast %0 : vector<1x8x128xf32> to vector<8x128xf32>
    %c1 = arith.constant 1 : index
    %c0_2 = arith.constant 0 : index
    %c0_3 = arith.constant 0 : index
    %2 = vector.load %arg1[%c1, %c0_2, %c0_3] : memref<2x8x128xf32, #tpu.memory_space<vmem>>, vector<1x8x128xf32>
    %3 = vector.shape_cast %2 : vector<1x8x128xf32> to vector<8x128xf32>
    %c0_4 = arith.constant 0 : index
    %4 = memref.load %arg2[%c0_4] : memref<20xf32, #tpu.memory_space<smem>>
    %5 = vector.broadcast %4 : f32 to vector<8x128xf32>
    %6 = arith.mulf %5, %1 : vector<8x128xf32>
    %c1_5 = arith.constant 1 : index
    %7 = memref.load %arg2[%c1_5] : memref<20xf32, #tpu.memory_space<smem>>
    %8 = vector.broadcast %7 : f32 to vector<8x128xf32>
    %9 = arith.mulf %8, %3 : vector<8x128xf32>
    %10 = arith.addf %6, %9 : vector<8x128xf32>
    %c0_6 = arith.constant 0 : index
    %11 = memref.load %arg3[%c0_6] : memref<10xf32, #tpu.memory_space<smem>>
    %12 = vector.broadcast %11 : f32 to vector<8x128xf32>
    %13 = arith.addf %10, %12 : vector<8x128xf32>
    %cst = arith.constant 0.000000e+00 : f32
    %14 = vector.broadcast %cst : f32 to vector<8x128xf32>
    %15 = arith.maximumf %13, %14 : vector<8x128xf32>
    %c0_7 = arith.constant 0 : index
    %16 = memref.load %arg4[%c0_7] : memref<10xf32, #tpu.memory_space<smem>>
    %17 = vector.broadcast %16 : f32 to vector<8x128xf32>
    %18 = arith.mulf %17, %15 : vector<8x128xf32>
    %c0_8 = arith.constant 0 : index
    %19 = memref.load %arg5[%c0_8] : memref<1xf32, #tpu.memory_space<smem>>
    %20 = vector.broadcast %19 : f32 to vector<8x128xf32>
    %21 = arith.addf %18, %20 : vector<8x128xf32>
    %c2 = arith.constant 2 : index
    %22 = memref.load %arg2[%c2] : memref<20xf32, #tpu.memory_space<smem>>
    %23 = vector.broadcast %22 : f32 to vector<8x128xf32>
    %24 = arith.mulf %23, %1 : vector<8x128xf32>
    %c3 = arith.constant 3 : index
    %25 = memref.load %arg2[%c3] : memref<20xf32, #tpu.memory_space<smem>>
    %26 = vector.broadcast %25 : f32 to vector<8x128xf32>
    %27 = arith.mulf %26, %3 : vector<8x128xf32>
    %28 = arith.addf %24, %27 : vector<8x128xf32>
    %c1_9 = arith.constant 1 : index
    %29 = memref.load %arg3[%c1_9] : memref<10xf32, #tpu.memory_space<smem>>
    %30 = vector.broadcast %29 : f32 to vector<8x128xf32>
    %31 = arith.addf %28, %30 : vector<8x128xf32>
    %cst_10 = arith.constant 0.000000e+00 : f32
    %32 = vector.broadcast %cst_10 : f32 to vector<8x128xf32>
    %33 = arith.maximumf %31, %32 : vector<8x128xf32>
    %c1_11 = arith.constant 1 : index
    %34 = memref.load %arg4[%c1_11] : memref<10xf32, #tpu.memory_space<smem>>
    %35 = vector.broadcast %34 : f32 to vector<8x128xf32>
    %36 = arith.mulf %35, %33 : vector<8x128xf32>
    %37 = arith.addf %21, %36 : vector<8x128xf32>
    %c4 = arith.constant 4 : index
    %38 = memref.load %arg2[%c4] : memref<20xf32, #tpu.memory_space<smem>>
    %39 = vector.broadcast %38 : f32 to vector<8x128xf32>
    %40 = arith.mulf %39, %1 : vector<8x128xf32>
    %c5 = arith.constant 5 : index
    %41 = memref.load %arg2[%c5] : memref<20xf32, #tpu.memory_space<smem>>
    %42 = vector.broadcast %41 : f32 to vector<8x128xf32>
    %43 = arith.mulf %42, %3 : vector<8x128xf32>
    %44 = arith.addf %40, %43 : vector<8x128xf32>
    %c2_12 = arith.constant 2 : index
    %45 = memref.load %arg3[%c2_12] : memref<10xf32, #tpu.memory_space<smem>>
    %46 = vector.broadcast %45 : f32 to vector<8x128xf32>
    %47 = arith.addf %44, %46 : vector<8x128xf32>
    %cst_13 = arith.constant 0.000000e+00 : f32
    %48 = vector.broadcast %cst_13 : f32 to vector<8x128xf32>
    %49 = arith.maximumf %47, %48 : vector<8x128xf32>
    %c2_14 = arith.constant 2 : index
    %50 = memref.load %arg4[%c2_14] : memref<10xf32, #tpu.memory_space<smem>>
    %51 = vector.broadcast %50 : f32 to vector<8x128xf32>
    %52 = arith.mulf %51, %49 : vector<8x128xf32>
    %53 = arith.addf %37, %52 : vector<8x128xf32>
    %c6 = arith.constant 6 : index
    %54 = memref.load %arg2[%c6] : memref<20xf32, #tpu.memory_space<smem>>
    %55 = vector.broadcast %54 : f32 to vector<8x128xf32>
    %56 = arith.mulf %55, %1 : vector<8x128xf32>
    %c7 = arith.constant 7 : index
    %57 = memref.load %arg2[%c7] : memref<20xf32, #tpu.memory_space<smem>>
    %58 = vector.broadcast %57 : f32 to vector<8x128xf32>
    %59 = arith.mulf %58, %3 : vector<8x128xf32>
    %60 = arith.addf %56, %59 : vector<8x128xf32>
    %c3_15 = arith.constant 3 : index
    %61 = memref.load %arg3[%c3_15] : memref<10xf32, #tpu.memory_space<smem>>
    %62 = vector.broadcast %61 : f32 to vector<8x128xf32>
    %63 = arith.addf %60, %62 : vector<8x128xf32>
    %cst_16 = arith.constant 0.000000e+00 : f32
    %64 = vector.broadcast %cst_16 : f32 to vector<8x128xf32>
    %65 = arith.maximumf %63, %64 : vector<8x128xf32>
    %c3_17 = arith.constant 3 : index
    %66 = memref.load %arg4[%c3_17] : memref<10xf32, #tpu.memory_space<smem>>
    %67 = vector.broadcast %66 : f32 to vector<8x128xf32>
    %68 = arith.mulf %67, %65 : vector<8x128xf32>
    %69 = arith.addf %53, %68 : vector<8x128xf32>
    %c8 = arith.constant 8 : index
    %70 = memref.load %arg2[%c8] : memref<20xf32, #tpu.memory_space<smem>>
    %71 = vector.broadcast %70 : f32 to vector<8x128xf32>
    %72 = arith.mulf %71, %1 : vector<8x128xf32>
    %c9 = arith.constant 9 : index
    %73 = memref.load %arg2[%c9] : memref<20xf32, #tpu.memory_space<smem>>
    %74 = vector.broadcast %73 : f32 to vector<8x128xf32>
    %75 = arith.mulf %74, %3 : vector<8x128xf32>
    %76 = arith.addf %72, %75 : vector<8x128xf32>
    %c4_18 = arith.constant 4 : index
    %77 = memref.load %arg3[%c4_18] : memref<10xf32, #tpu.memory_space<smem>>
    %78 = vector.broadcast %77 : f32 to vector<8x128xf32>
    %79 = arith.addf %76, %78 : vector<8x128xf32>
    %cst_19 = arith.constant 0.000000e+00 : f32
    %80 = vector.broadcast %cst_19 : f32 to vector<8x128xf32>
    %81 = arith.maximumf %79, %80 : vector<8x128xf32>
    %c4_20 = arith.constant 4 : index
    %82 = memref.load %arg4[%c4_20] : memref<10xf32, #tpu.memory_space<smem>>
    %83 = vector.broadcast %82 : f32 to vector<8x128xf32>
    %84 = arith.mulf %83, %81 : vector<8x128xf32>
    %85 = arith.addf %69, %84 : vector<8x128xf32>
    %c10 = arith.constant 10 : index
    %86 = memref.load %arg2[%c10] : memref<20xf32, #tpu.memory_space<smem>>
    %87 = vector.broadcast %86 : f32 to vector<8x128xf32>
    %88 = arith.mulf %87, %1 : vector<8x128xf32>
    %c11 = arith.constant 11 : index
    %89 = memref.load %arg2[%c11] : memref<20xf32, #tpu.memory_space<smem>>
    %90 = vector.broadcast %89 : f32 to vector<8x128xf32>
    %91 = arith.mulf %90, %3 : vector<8x128xf32>
    %92 = arith.addf %88, %91 : vector<8x128xf32>
    %c5_21 = arith.constant 5 : index
    %93 = memref.load %arg3[%c5_21] : memref<10xf32, #tpu.memory_space<smem>>
    %94 = vector.broadcast %93 : f32 to vector<8x128xf32>
    %95 = arith.addf %92, %94 : vector<8x128xf32>
    %cst_22 = arith.constant 0.000000e+00 : f32
    %96 = vector.broadcast %cst_22 : f32 to vector<8x128xf32>
    %97 = arith.maximumf %95, %96 : vector<8x128xf32>
    %c5_23 = arith.constant 5 : index
    %98 = memref.load %arg4[%c5_23] : memref<10xf32, #tpu.memory_space<smem>>
    %99 = vector.broadcast %98 : f32 to vector<8x128xf32>
    %100 = arith.mulf %99, %97 : vector<8x128xf32>
    %101 = arith.addf %85, %100 : vector<8x128xf32>
    %c12 = arith.constant 12 : index
    %102 = memref.load %arg2[%c12] : memref<20xf32, #tpu.memory_space<smem>>
    %103 = vector.broadcast %102 : f32 to vector<8x128xf32>
    %104 = arith.mulf %103, %1 : vector<8x128xf32>
    %c13 = arith.constant 13 : index
    %105 = memref.load %arg2[%c13] : memref<20xf32, #tpu.memory_space<smem>>
    %106 = vector.broadcast %105 : f32 to vector<8x128xf32>
    %107 = arith.mulf %106, %3 : vector<8x128xf32>
    %108 = arith.addf %104, %107 : vector<8x128xf32>
    %c6_24 = arith.constant 6 : index
    %109 = memref.load %arg3[%c6_24] : memref<10xf32, #tpu.memory_space<smem>>
    %110 = vector.broadcast %109 : f32 to vector<8x128xf32>
    %111 = arith.addf %108, %110 : vector<8x128xf32>
    %cst_25 = arith.constant 0.000000e+00 : f32
    %112 = vector.broadcast %cst_25 : f32 to vector<8x128xf32>
    %113 = arith.maximumf %111, %112 : vector<8x128xf32>
    %c6_26 = arith.constant 6 : index
    %114 = memref.load %arg4[%c6_26] : memref<10xf32, #tpu.memory_space<smem>>
    %115 = vector.broadcast %114 : f32 to vector<8x128xf32>
    %116 = arith.mulf %115, %113 : vector<8x128xf32>
    %117 = arith.addf %101, %116 : vector<8x128xf32>
    %c14 = arith.constant 14 : index
    %118 = memref.load %arg2[%c14] : memref<20xf32, #tpu.memory_space<smem>>
    %119 = vector.broadcast %118 : f32 to vector<8x128xf32>
    %120 = arith.mulf %119, %1 : vector<8x128xf32>
    %c15 = arith.constant 15 : index
    %121 = memref.load %arg2[%c15] : memref<20xf32, #tpu.memory_space<smem>>
    %122 = vector.broadcast %121 : f32 to vector<8x128xf32>
    %123 = arith.mulf %122, %3 : vector<8x128xf32>
    %124 = arith.addf %120, %123 : vector<8x128xf32>
    %c7_27 = arith.constant 7 : index
    %125 = memref.load %arg3[%c7_27] : memref<10xf32, #tpu.memory_space<smem>>
    %126 = vector.broadcast %125 : f32 to vector<8x128xf32>
    %127 = arith.addf %124, %126 : vector<8x128xf32>
    %cst_28 = arith.constant 0.000000e+00 : f32
    %128 = vector.broadcast %cst_28 : f32 to vector<8x128xf32>
    %129 = arith.maximumf %127, %128 : vector<8x128xf32>
    %c7_29 = arith.constant 7 : index
    %130 = memref.load %arg4[%c7_29] : memref<10xf32, #tpu.memory_space<smem>>
    %131 = vector.broadcast %130 : f32 to vector<8x128xf32>
    %132 = arith.mulf %131, %129 : vector<8x128xf32>
    %133 = arith.addf %117, %132 : vector<8x128xf32>
    %c16 = arith.constant 16 : index
    %134 = memref.load %arg2[%c16] : memref<20xf32, #tpu.memory_space<smem>>
    %135 = vector.broadcast %134 : f32 to vector<8x128xf32>
    %136 = arith.mulf %135, %1 : vector<8x128xf32>
    %c17 = arith.constant 17 : index
    %137 = memref.load %arg2[%c17] : memref<20xf32, #tpu.memory_space<smem>>
    %138 = vector.broadcast %137 : f32 to vector<8x128xf32>
    %139 = arith.mulf %138, %3 : vector<8x128xf32>
    %140 = arith.addf %136, %139 : vector<8x128xf32>
    %c8_30 = arith.constant 8 : index
    %141 = memref.load %arg3[%c8_30] : memref<10xf32, #tpu.memory_space<smem>>
    %142 = vector.broadcast %141 : f32 to vector<8x128xf32>
    %143 = arith.addf %140, %142 : vector<8x128xf32>
    %cst_31 = arith.constant 0.000000e+00 : f32
    %144 = vector.broadcast %cst_31 : f32 to vector<8x128xf32>
    %145 = arith.maximumf %143, %144 : vector<8x128xf32>
    %c8_32 = arith.constant 8 : index
    %146 = memref.load %arg4[%c8_32] : memref<10xf32, #tpu.memory_space<smem>>
    %147 = vector.broadcast %146 : f32 to vector<8x128xf32>
    %148 = arith.mulf %147, %145 : vector<8x128xf32>
    %149 = arith.addf %133, %148 : vector<8x128xf32>
    %c18 = arith.constant 18 : index
    %150 = memref.load %arg2[%c18] : memref<20xf32, #tpu.memory_space<smem>>
    %151 = vector.broadcast %150 : f32 to vector<8x128xf32>
    %152 = arith.mulf %151, %1 : vector<8x128xf32>
    %c19 = arith.constant 19 : index
    %153 = memref.load %arg2[%c19] : memref<20xf32, #tpu.memory_space<smem>>
    %154 = vector.broadcast %153 : f32 to vector<8x128xf32>
    %155 = arith.mulf %154, %3 : vector<8x128xf32>
    %156 = arith.addf %152, %155 : vector<8x128xf32>
    %c9_33 = arith.constant 9 : index
    %157 = memref.load %arg3[%c9_33] : memref<10xf32, #tpu.memory_space<smem>>
    %158 = vector.broadcast %157 : f32 to vector<8x128xf32>
    %159 = arith.addf %156, %158 : vector<8x128xf32>
    %cst_34 = arith.constant 0.000000e+00 : f32
    %160 = vector.broadcast %cst_34 : f32 to vector<8x128xf32>
    %161 = arith.maximumf %159, %160 : vector<8x128xf32>
    %c9_35 = arith.constant 9 : index
    %162 = memref.load %arg4[%c9_35] : memref<10xf32, #tpu.memory_space<smem>>
    %163 = vector.broadcast %162 : f32 to vector<8x128xf32>
    %164 = arith.mulf %163, %161 : vector<8x128xf32>
    %165 = arith.addf %149, %164 : vector<8x128xf32>
    %166 = arith.subf %165, %165 : vector<8x128xf32>
    %167 = math.exp %166 : vector<8x128xf32>
    %c0_36 = arith.constant 0 : index
    %c0_37 = arith.constant 0 : index
    %168 = vector.load %arg6[%c0_36, %c0_37] : memref<8x128xf32, #tpu.memory_space<vmem>>, vector<8x128xf32>
    tpu.vector_store %arg6[%c0_36, %c0_37], %167 {strides = array<i32>} : memref<8x128xf32, #tpu.memory_space<vmem>>, vector<8x128xf32>,
    return
  }
  func.func @transform_0(%arg0: i32) -> (i32, i32, i32) {
    %c0_i32 = arith.constant 0 : i32
    %c0_i32_0 = arith.constant 0 : i32
    %c0_i32_1 = arith.constant 0 : i32
    return %c0_i32, %arg0, %c0_i32_0 : i32, i32, i32
  }
  func.func @transform_1(%arg0: i32) -> i32 {
    %c0_i32 = arith.constant 0 : i32
    %c0_i32_0 = arith.constant 0 : i32
    return %c0_i32 : i32
  }
  func.func @transform_2(%arg0: i32) -> i32 {
    %c0_i32 = arith.constant 0 : i32
    %c0_i32_0 = arith.constant 0 : i32
    return %c0_i32 : i32
  }
  func.func @transform_3(%arg0: i32) -> i32 {
    %c0_i32 = arith.constant 0 : i32
    %c0_i32_0 = arith.constant 0 : i32
    return %c0_i32 : i32
  }
  func.func @transform_4(%arg0: i32) -> i32 {
    %c0_i32 = arith.constant 0 : i32
    %c0_i32_0 = arith.constant 0 : i32
    return %c0_i32 : i32
  }
  func.func @transform_5(%arg0: i32) -> (i32, i32) {
    %c0_i32 = arith.constant 0 : i32
    %c0_i32_0 = arith.constant 0 : i32
    return %arg0, %c0_i32 : i32, i32
  }
}

</mosaic_0001>

<llo_original>
// kernel: tpu_custom_call.1
$region0: #{tpu_custom_call.1}
  #allocation0 [shape = 'u32[]', space=smem, size = 0x4, offset = 0x4, fixed_abs, tag = 'smem constant byte address 0x4 - core index']
  #allocation1 [shape = 'u32[144,128]{1,0:T(1,128)}', space=vmem, size = 0x12000, scoped, tag = 'internal scratch']
  #allocation2 [shape = 'f32[1]{0:T(128)S(6)}', space=smem, size = 0x200, scoped, tag = 'scoped memory for tpu_custom_call.1']
  %s0 = inlined_call_operand.hbm [shape: f32[2,8,128], index: 0, kind: input, shape index: {}]
  %s1 = inlined_call_operand.vmem [shape: f32[20], index: 1, kind: input, shape index: {}]
  %s2 = inlined_call_operand.vmem [shape: f32[10], index: 2, kind: input, shape index: {}]
  %s3 = inlined_call_operand.vmem [shape: f32[10], index: 3, kind: input, shape index: {}]
  %s4 = inlined_call_operand.<no memory space> [shape: f32[1], index: 4, kind: input, shape index: {}]
  %s5 = inlined_call_operand.hbm [shape: f32[8,128], index: 5, kind: output, shape index: {}]
  %s6 = sld [smem:[#allocation0]]
  $region46: #{tpu_custom_call.1} parent=0
    _
  %s8 = ssub.s32 1, %s6
  %s9 = scalar_select 0, %s8, %s6
  %10 = sst [smem:[#allocation2]] %s4
  $region1: #{tpu_custom_call.1} parent=0
    #allocation3 [shape = 'u8[8192]{0}', space=vmem, size = 0x2000, scoped, tag = 'input window, operand 0, single buffered']
    #allocation4 [shape = 's32[1]{0}', space=sflag, size = 0x4, scoped, tag = 'scoped memory for tpu_custom_call.1']
    #allocation5 [shape = 's32[1]{0}', space=sflag, size = 0x4, scoped, tag = 'scoped memory for tpu_custom_call.1']
    #allocation6 [shape = 's32[1]{0}', space=sflag, size = 0x4, scoped, tag = 'scoped memory for tpu_custom_call.1']
    #allocation7 [shape = 'u8[512]{0}', space=smem, size = 0x200, scoped, tag = 'input window, operand 1, single buffered']
    #allocation8 [shape = 'u8[512]{0}', space=smem, size = 0x200, scoped, tag = 'input window, operand 2, single buffered']
    #allocation9 [shape = 's32[1]{0}', space=sflag, size = 0x4, scoped, tag = 'scoped memory for tpu_custom_call.1']
    #allocation10 [shape = 'u8[512]{0}', space=smem, size = 0x200, scoped, tag = 'input window, operand 3, single buffered']
    #allocation11 [shape = 'u8[4096]{0}', space=vmem, size = 0x1000, scoped, tag = 'output window, operand 0, single buffered']
    %11 = vsyncpa [#allocation4], 0
    %12 = vsyncpa [#allocation6], 0
    %13 = vsyncpa [#allocation9], 0
    %14 = vsyncpa [#allocation5], 0
    // Predicated region
    $region2: #{tpu_custom_call.1} parent=1 // pred_check
      _
    $region3: #{tpu_custom_call.1} parent=1 // pred_check_branch
      %16 = sbr.rel (0) target = $region5
    $region4: #{tpu_custom_call.1} parent=1 // pred_region
      %s18 = ssub.s32 256, 256
      %19 = vsyncadd [#allocation4], %s18
      %s20 = sshll.u32 [#allocation3], 4
      %s21 = int_to_ptr.vmem [resolvable:$true] %s20
      %26 = dma.hbm_to_vmem [thread:$0]  %s0, 256, %s21, [#allocation4], 128, 128, 8
    $region5: #{tpu_custom_call.1} parent=1 // pred_fallthru
      _
    // Predicated region
    $region6: #{tpu_custom_call.1} parent=1 // pred_check
      _
    $region7: #{tpu_custom_call.1} parent=1 // pred_check_branch
      %28 = sbr.rel (0) target = $region9
    $region8: #{tpu_custom_call.1} parent=1 // pred_region
      %s30 = ssub.s32 16, 16
      %31 = vsyncadd [#allocation6], %s30
      %s33 = sshll.u32 %s1, 4
      %s34 = int_to_ptr.vmem [resolvable:$true] %s33
      %36 = dma.vmem_to_smem %s34, 16, [#allocation7], [#allocation6]
    $region9: #{tpu_custom_call.1} parent=1 // pred_fallthru
      _
    // Predicated region
    $region10: #{tpu_custom_call.1} parent=1 // pred_check
      _
    $region11: #{tpu_custom_call.1} parent=1 // pred_check_branch
      %38 = sbr.rel (0) target = $region13
    $region12: #{tpu_custom_call.1} parent=1 // pred_region
      %s40 = ssub.s32 16, 16
      %41 = vsyncadd [#allocation9], %s40
      %s43 = sshll.u32 %s2, 4
      %s44 = int_to_ptr.vmem [resolvable:$true] %s43
      %46 = dma.vmem_to_smem %s44, 16, [#allocation8], [#allocation9]
    $region13: #{tpu_custom_call.1} parent=1 // pred_fallthru
      _
    // Predicated region
    $region14: #{tpu_custom_call.1} parent=1 // pred_check
      _
    $region15: #{tpu_custom_call.1} parent=1 // pred_check_branch
      %48 = sbr.rel (0) target = $region17
    $region16: #{tpu_custom_call.1} parent=1 // pred_region
      %s50 = ssub.s32 16, 16
      %51 = vsyncadd [#allocation9], %s50
      %s53 = sshll.u32 %s3, 4
      %s54 = int_to_ptr.vmem [resolvable:$true] %s53
      %56 = dma.vmem_to_smem %s54, 16, [#allocation10], [#allocation9]
    $region17: #{tpu_custom_call.1} parent=1 // pred_fallthru
      _
    // Predicated region
    $region18: #{tpu_custom_call.1} parent=1 // pred_check
      _
    $region19: #{tpu_custom_call.1} parent=1 // pred_check_branch
      %58 = sbr.rel (0) target = $region21
    $region20: #{tpu_custom_call.1} parent=1 // pred_region
      _
    $region21: #{tpu_custom_call.1} parent=1 // pred_fallthru
      _
    // Predicated region
    $region22: #{tpu_custom_call.1} parent=1 // pred_check
      _
    $region23: #{tpu_custom_call.1} parent=1 // pred_check_branch
      %60 = sbr.rel (0) target = $region25
    $region24: #{tpu_custom_call.1} parent=1 // pred_region
      %61 = dma.done [#allocation4], 256
    $region25: #{tpu_custom_call.1} parent=1 // pred_fallthru
      _
    // Predicated region
    $region26: #{tpu_custom_call.1} parent=1 // pred_check
      _
    $region27: #{tpu_custom_call.1} parent=1 // pred_check_branch
      %63 = sbr.rel (0) target = $region29
    $region28: #{tpu_custom_call.1} parent=1 // pred_region
      %64 = dma.done [#allocation6], 16
    $region29: #{tpu_custom_call.1} parent=1 // pred_fallthru
      _
    // Predicated region
    $region30: #{tpu_custom_call.1} parent=1 // pred_check
      _
    $region31: #{tpu_custom_call.1} parent=1 // pred_check_branch
      %66 = sbr.rel (0) target = $region33
    $region32: #{tpu_custom_call.1} parent=1 // pred_region
      %67 = dma.done [#allocation9], 16
    $region33: #{tpu_custom_call.1} parent=1 // pred_fallthru
      _
    // Predicated region
    $region34: #{tpu_custom_call.1} parent=1 // pred_check
      _
    $region35: #{tpu_custom_call.1} parent=1 // pred_check_branch
      %69 = sbr.rel (0) target = $region37
    $region36: #{tpu_custom_call.1} parent=1 // pred_region
      %70 = dma.done [#allocation9], 16
    $region37: #{tpu_custom_call.1} parent=1 // pred_fallthru
      _
    %71 = sfence
    %v72 = vld [vmem:[#allocation3] sm:$0xff]
    %s73 = scalar_lea.vmem [#allocation3], 8
    %v74 = vld [vmem:[%s73] sm:$0xff]
    %s75 = sld [smem:[#allocation7]]
    %v76 = vstv %s75
    %v77 = vmul.f32 %v76, %v72
    %s78 = sld [smem:[#allocation7 + $0x1]]
    %v79 = vstv %s78
    %v80 = vmul.f32 %v79, %v74
    %v81 = vadd.f32 %v77, %v80
    %s82 = sld [smem:[#allocation8]]
    %v83 = vstv %s82
    %v84 = vadd.f32 %v81, %v83
    %v85 = vmax.f32 %v84, 0.0
    %s86 = sld [smem:[#allocation10]]
    %v87 = vstv %s86
    %v88 = vmul.f32 %v87, %v85
    %s89 = sld [smem:[#allocation2]]
    %v90 = vstv %s89
    %v91 = vadd.f32 %v88, %v90
    %s92 = sld [smem:[#allocation7 + $0x2]]
    %v93 = vstv %s92
    %v94 = vmul.f32 %v93, %v72
    %s95 = sld [smem:[#allocation7 + $0x3]]
    %v96 = vstv %s95
    %v97 = vmul.f32 %v96, %v74
    %v98 = vadd.f32 %v94, %v97
    %s99 = sld [smem:[#allocation8 + $0x1]]
    %v100 = vstv %s99
    %v101 = vadd.f32 %v98, %v100
    %v102 = vmax.f32 %v101, 0.0
    %s103 = sld [smem:[#allocation10 + $0x1]]
    %v104 = vstv %s103
    %v105 = vmul.f32 %v104, %v102
    %v106 = vadd.f32 %v91, %v105
    %s107 = sld [smem:[#allocation7 + $0x4]]
    %v108 = vstv %s107
    %v109 = vmul.f32 %v108, %v72
    %s110 = sld [smem:[#allocation7 + $0x5]]
    %v111 = vstv %s110
    %v112 = vmul.f32 %v111, %v74
    %v113 = vadd.f32 %v109, %v112
    %s114 = sld [smem:[#allocation8 + $0x2]]
    %v115 = vstv %s114
    %v116 = vadd.f32 %v113, %v115
    %v117 = vmax.f32 %v116, 0.0
    %s118 = sld [smem:[#allocation10 + $0x2]]
    %v119 = vstv %s118
    %v120 = vmul.f32 %v119, %v117
    %v121 = vadd.f32 %v106, %v120
    %s122 = sld [smem:[#allocation7 + $0x6]]
    %v123 = vstv %s122
    %v124 = vmul.f32 %v123, %v72
    %s125 = sld [smem:[#allocation7 + $0x7]]
    %v126 = vstv %s125
    %v127 = vmul.f32 %v126, %v74
    %v128 = vadd.f32 %v124, %v127
    %s129 = sld [smem:[#allocation8 + $0x3]]
    %v130 = vstv %s129
    %v131 = vadd.f32 %v128, %v130
    %v132 = vmax.f32 %v131, 0.0
    %s133 = sld [smem:[#allocation10 + $0x3]]
    %v134 = vstv %s133
    %v135 = vmul.f32 %v134, %v132
    %v136 = vadd.f32 %v121, %v135
    %s137 = sld [smem:[#allocation7 + $0x8]]
    %v138 = vstv %s137
    %v139 = vmul.f32 %v138, %v72
    %s140 = sld [smem:[#allocation7 + $0x9]]
    %v141 = vstv %s140
    %v142 = vmul.f32 %v141, %v74
    %v143 = vadd.f32 %v139, %v142
    %s144 = sld [smem:[#allocation8 + $0x4]]
    %v145 = vstv %s144
    %v146 = vadd.f32 %v143, %v145
    %v147 = vmax.f32 %v146, 0.0
    %s148 = sld [smem:[#allocation10 + $0x4]]
    %v149 = vstv %s148
    %v150 = vmul.f32 %v149, %v147
    %v151 = vadd.f32 %v136, %v150
    %s152 = sld [smem:[#allocation7 + $0xa]]
    %v153 = vstv %s152
    %v154 = vmul.f32 %v153, %v72
    %s155 = sld [smem:[#allocation7 + $0xb]]
    %v156 = vstv %s155
    %v157 = vmul.f32 %v156, %v74
    %v158 = vadd.f32 %v154, %v157
    %s159 = sld [smem:[#allocation8 + $0x5]]
    %v160 = vstv %s159
    %v161 = vadd.f32 %v158, %v160
    %v162 = vmax.f32 %v161, 0.0
    %s163 = sld [smem:[#allocation10 + $0x5]]
    %v164 = vstv %s163
    %v165 = vmul.f32 %v164, %v162
    %v166 = vadd.f32 %v151, %v165
    %s167 = sld [smem:[#allocation7 + $0xc]]
    %v168 = vstv %s167
    %v169 = vmul.f32 %v168, %v72
    %s170 = sld [smem:[#allocation7 + $0xd]]
    %v171 = vstv %s170
    %v172 = vmul.f32 %v171, %v74
    %v173 = vadd.f32 %v169, %v172
    %s174 = sld [smem:[#allocation8 + $0x6]]
    %v175 = vstv %s174
    %v176 = vadd.f32 %v173, %v175
    %v177 = vmax.f32 %v176, 0.0
    %s178 = sld [smem:[#allocation10 + $0x6]]
    %v179 = vstv %s178
    %v180 = vmul.f32 %v179, %v177
    %v181 = vadd.f32 %v166, %v180
    %s182 = sld [smem:[#allocation7 + $0xe]]
    %v183 = vstv %s182
    %v184 = vmul.f32 %v183, %v72
    %s185 = sld [smem:[#allocation7 + $0xf]]
    %v186 = vstv %s185
    %v187 = vmul.f32 %v186, %v74
    %v188 = vadd.f32 %v184, %v187
    %s189 = sld [smem:[#allocation8 + $0x7]]
    %v190 = vstv %s189
    %v191 = vadd.f32 %v188, %v190
    %v192 = vmax.f32 %v191, 0.0
    %s193 = sld [smem:[#allocation10 + $0x7]]
    %v194 = vstv %s193
    %v195 = vmul.f32 %v194, %v192
    %v196 = vadd.f32 %v181, %v195
    %s197 = sld [smem:[#allocation7 + $0x10]]
    %v198 = vstv %s197
    %v199 = vmul.f32 %v198, %v72
    %s200 = sld [smem:[#allocation7 + $0x11]]
    %v201 = vstv %s200
    %v202 = vmul.f32 %v201, %v74
    %v203 = vadd.f32 %v199, %v202
    %s204 = sld [smem:[#allocation8 + $0x8]]
    %v205 = vstv %s204
    %v206 = vadd.f32 %v203, %v205
    %v207 = vmax.f32 %v206, 0.0
    %s208 = sld [smem:[#allocation10 + $0x8]]
    %v209 = vstv %s208
    %v210 = vmul.f32 %v209, %v207
    %v211 = vadd.f32 %v196, %v210
    %s212 = sld [smem:[#allocation7 + $0x12]]
    %v213 = vstv %s212
    %v214 = vmul.f32 %v213, %v72
    %s215 = sld [smem:[#allocation7 + $0x13]]
    %v216 = vstv %s215
    %v217 = vmul.f32 %v216, %v74
    %v218 = vadd.f32 %v214, %v217
    %s219 = sld [smem:[#allocation8 + $0x9]]
    %v220 = vstv %s219
    %v221 = vadd.f32 %v218, %v220
    %v222 = vmax.f32 %v221, 0.0
    %s223 = sld [smem:[#allocation10 + $0x9]]
    %v224 = vstv %s223
    %v225 = vmul.f32 %v224, %v222
    %v226 = vadd.f32 %v211, %v225
    %v227 = vsub.f32 %v226, %v226
    %v228 = vmul.f32 %v227, 1.442695
    %v229 = vpow.pop %v228
    %230 = vst [vmem:[#allocation11] sm:$0xff] %v229
    // Predicated region
    $region38: #{tpu_custom_call.1} parent=1 // pred_check
      _
    $region39: #{tpu_custom_call.1} parent=1 // pred_check_branch
      %232 = sbr.rel (0) target = $region41
    $region40: #{tpu_custom_call.1} parent=1 // pred_region
      %s234 = ssub.s32 128, 128
      %235 = vsyncadd [#allocation5], %s234
      %s237 = sshll.u32 [#allocation11], 4
      %s238 = int_to_ptr.vmem [resolvable:$true] %s237
      %240 = dma.vmem_to_hbm [thread:$0]  %s238, 128, %s5, [#allocation5]
    $region41: #{tpu_custom_call.1} parent=1 // pred_fallthru
      _
    // Predicated region
    $region42: #{tpu_custom_call.1} parent=1 // pred_check
      _
    $region43: #{tpu_custom_call.1} parent=1 // pred_check_branch
      %242 = sbr.rel (0) target = $region45
    $region44: #{tpu_custom_call.1} parent=1 // pred_region
      %243 = dma.done [#allocation5], 128
    $region45: #{tpu_custom_call.1} parent=1 // pred_fallthru
      _
    %244 = vsyncpa [#allocation4], 1
    %245 = vsyncpa [#allocation5], 1
    %246 = vsyncpa [#allocation6], 1
    %247 = vsyncpa [#allocation9], 1

</llo_original>
